<compile_context>
chip_gen: v5e
topology: v5e:2x2
jax: 0.10.0
libtpu: 0.0.40
codegen_flags: <defaults>
</compile_context>

<pallas_src>
import jax
import jax.numpy as jnp
from jax.experimental import pallas as pl
from jax.experimental.pallas import tpu as pltpu


# ----------------------------- Pallas kernel --------------------------------
def estnet_kernel(x_ref,        # VMEM (D, B*T*N)       features on sublanes, positions on lanes
                  w_in_t_ref,   # VMEM (H, D)
                  b_in_ref,     # VMEM (H, 1)
                  mix_ref,      # VMEM (T*N, T_out*N)   kron(w_t.T, adj.T)
                  w_out_t_ref,  # VMEM (D_out, H)
                  b_out_ref,    # VMEM (D_out, 1)       dataset-selected bias
                  out_ref):     # VMEM (B, D_out, T_out*N)  lane-dense output slab
    B = out_ref.shape[0]
    TN = mix_ref.shape[0]

    # Feature embedding for the WHOLE batch in one MXU pass: lanes = B*T*N.
    h = jnp.dot(w_in_t_ref[...], x_ref[...],
                preferred_element_type=jnp.float32) + b_in_ref[...]
    h = jnp.maximum(h, 0.0)                                      # (H, B*T*N)

    # Fused spatio-temporal mixing + output projection per batch element.
    # B is tiny and static -> Python unroll; each lane slice is 128-aligned.
    for b in range(B):
        h_b = h[:, b * TN:(b + 1) * TN]                          # (H, T*N)
        z_b = jnp.dot(h_b, mix_ref[...],
                      preferred_element_type=jnp.float32)        # (H, T_out*N)
        z_b = jnp.maximum(z_b, 0.0)
        y_b = jnp.dot(w_out_t_ref[...], z_b,
                      preferred_element_type=jnp.float32) + b_out_ref[...]
        out_ref[b] = y_b.astype(out_ref.dtype)                   # full-lane rows


# ------------------------------- wrapper -------------------------------------
def traffic_model_forward(params, source, label, select_dataset):
    """Equivalent of Traffic_model.forward(source, label, select_dataset)."""
    del label  # TODO(synk): label only used for scheduled sampling in training.
    B, T, N, D = source.shape
    H = params['w_in'].shape[1]
    T_out = params['w_t'].shape[0]
    D_out = params['w_out'].shape[1]

    # ---- wrapper-side layout plumbing (free for the kernel) ----
    # positions (b,t,n) -> lanes, features -> sublanes
    x_t = jnp.transpose(source, (3, 0, 1, 2)).reshape(D, B * T * N)
    w_in_t = params['w_in'].T                                 # (H, D)
    b_in_c = params['b_in'].reshape(H, 1)                     # (H, 1)
    # Spatial + temporal mixes are linear and commute; compose into one dense
    # operator so the kernel does one >=128-lane matmul instead of T tiny ones.
    mix = jnp.kron(params['w_t'].T, params['adj'].T)          # (T*N, T_out*N)
    w_out_t = params['w_out'].T                               # (D_out, H)
    b_out_c = params['b_out'][select_dataset].reshape(D_out, 1)

    vmem = pl.BlockSpec(memory_space=pltpu.MemorySpace.VMEM)
    out2d = pl.pallas_call(
        estnet_kernel,
        out_shape=jax.ShapeDtypeStruct((B, D_out, T_out * N), jnp.float32),
        in_specs=[vmem] * 6,
        out_specs=vmem,
    )(x_t, w_in_t, b_in_c, mix, w_out_t, b_out_c)

    # (B, D_out, T_out*N) -> (B, T_out, N, D_out)
    return jnp.transpose(out2d.reshape(B, D_out, T_out, N), (0, 2, 3, 1))


# --------------------------- parameter creation -------------------------------
def init_params(key, *, in_dim, hidden, num_nodes, t_in, t_out,
                input_base_dim, num_datasets):
    ks = jax.random.split(key, 6)
    w_in = jax.random.normal(ks[0], (in_dim, hidden), jnp.float32) * 0.1
    b_in = jnp.zeros((1, hidden), jnp.float32)
    # deterministic row-normalized adjacency
    a = jnp.abs(jax.random.normal(ks[1], (num_nodes, num_nodes), jnp.float32)) + 0.1
    adj = a / jnp.sum(a, axis=-1, keepdims=True)
    w_t = jax.random.normal(ks[2], (t_out, t_in), jnp.float32) * 0.1
    w_out = jax.random.normal(ks[3], (hidden, input_base_dim), jnp.float32) * 0.1
    b_out = jax.random.normal(ks[4], (num_datasets, input_base_dim), jnp.float32) * 0.01
    return dict(w_in=w_in, b_in=b_in, adj=adj, w_t=w_t, w_out=w_out, b_out=b_out)


# --------------------------- pure-JAX reference -------------------------------
def reference_forward(params, source, select_dataset):
    h = jnp.maximum(
        jnp.einsum('btnd,dh->btnh', source, params['w_in']) + params['b_in'][0], 0.0)
    s = jnp.einsum('nm,btmh->btnh', params['adj'], h)
    z = jnp.maximum(jnp.einsum('ot,btnh->bonh', params['w_t'], s), 0.0)
    y = jnp.einsum('bonh,hc->bonc', z, params['w_out']) + params['b_out'][select_dataset]
    return y


if __name__ == "__main__":
    # small shapes consistent with a traffic-forecasting forward
    B, T, N, D = 2, 8, 16, 4          # batch, input time-steps, nodes, input feat dim
    T_OUT = 8                         # predicted horizon
    HIDDEN = 32
    INPUT_BASE_DIM = 1                # args.input_base_dim
    NUM_DATASETS = 2

    key = jax.random.PRNGKey(0)
    k_src, k_lbl, k_par = jax.random.split(key, 3)

    source = jax.random.normal(k_src, (B, T, N, D), jnp.float32)
    label = jax.random.normal(k_lbl, (B, T_OUT, N, INPUT_BASE_DIM), jnp.float32)
    select_dataset = 0

    params = init_params(k_par, in_dim=D, hidden=HIDDEN, num_nodes=N,
                         t_in=T, t_out=T_OUT,
                         input_base_dim=INPUT_BASE_DIM,
                         num_datasets=NUM_DATASETS)

    x_predic = traffic_model_forward(params, source, label, select_dataset)
    x_predic = jax.block_until_ready(x_predic)
    assert x_predic.shape == (B, T_OUT, N, INPUT_BASE_DIM)

    x_ref = jax.block_until_ready(reference_forward(params, source, select_dataset))
    max_err = float(jnp.max(jnp.abs(x_predic - x_ref)))
    assert max_err < 5e-2, f"mismatch vs reference: {max_err}"

    print("KERNEL_OK")
</pallas_src>

<mosaic_0001>
module attributes {stable_mosaic.version = 11 : i64} {
  func.func @estnet_kernel(%arg0: memref<4x256xf32, #tpu.memory_space<vmem>>, %arg1: memref<32x4xf32, #tpu.memory_space<vmem>>, %arg2: memref<32x1xf32, #tpu.memory_space<vmem>>, %arg3: memref<128x128xf32, #tpu.memory_space<vmem>>, %arg4: memref<1x32xf32, #tpu.memory_space<vmem>>, %arg5: memref<1x1xf32, #tpu.memory_space<vmem>>, %arg6: memref<2x1x128xf32, #tpu.memory_space<vmem>>) attributes {dimension_semantics = [], scalar_prefetch = 0 : i64, scratch_operands = 0 : i64, tpu.core_type = #tpu.core_type<tc>} {
    %c0 = arith.constant 0 : index
    %c0_0 = arith.constant 0 : index
    %0 = vector.load %arg1[%c0, %c0_0] : memref<32x4xf32, #tpu.memory_space<vmem>>, vector<32x4xf32>
    %c0_1 = arith.constant 0 : index
    %c0_2 = arith.constant 0 : index
    %1 = vector.load %arg0[%c0_1, %c0_2] : memref<4x256xf32, #tpu.memory_space<vmem>>, vector<4x256xf32>
    %cst = arith.constant dense<0.000000e+00> : vector<32x256xf32>
    %2 = tpu.matmul %0, %1, %cst {dimension_numbers = #tpu.dot_dimension_numbers<[1], [0], [0], [1], [0, 0, 1, 1], [], []>} : vector<32x4xf32>, vector<4x256xf32>, vector<32x256xf32> -> vector<32x256xf32>
    %c0_3 = arith.constant 0 : index
    %c0_4 = arith.constant 0 : index
    %3 = vector.load %arg2[%c0_3, %c0_4] : memref<32x1xf32, #tpu.memory_space<vmem>>, vector<32x1xf32>
    %4 = vector.broadcast %3 : vector<32x1xf32> to vector<32x256xf32>
    %5 = arith.addf %2, %4 : vector<32x256xf32>
    %cst_5 = arith.constant 0.000000e+00 : f32
    %6 = vector.broadcast %cst_5 : f32 to vector<32x256xf32>
    %7 = arith.maximumf %5, %6 : vector<32x256xf32>
    %8 = vector.extract_strided_slice %7 {offsets = [0, 0], sizes = [32, 128], strides = [1, 1]} : vector<32x256xf32> to vector<32x128xf32>
    %c0_6 = arith.constant 0 : index
    %c0_7 = arith.constant 0 : index
    %9 = vector.load %arg3[%c0_6, %c0_7] : memref<128x128xf32, #tpu.memory_space<vmem>>, vector<128x128xf32>
    %cst_8 = arith.constant dense<0.000000e+00> : vector<32x128xf32>
    %10 = tpu.matmul %8, %9, %cst_8 {dimension_numbers = #tpu.dot_dimension_numbers<[1], [0], [0], [1], [0, 0, 1, 1], [], []>} : vector<32x128xf32>, vector<128x128xf32>, vector<32x128xf32> -> vector<32x128xf32>
    %cst_9 = arith.constant 0.000000e+00 : f32
    %11 = vector.broadcast %cst_9 : f32 to vector<32x128xf32>
    %12 = arith.maximumf %10, %11 : vector<32x128xf32>
    %c0_10 = arith.constant 0 : index
    %c0_11 = arith.constant 0 : index
    %13 = vector.load %arg4[%c0_10, %c0_11] : memref<1x32xf32, #tpu.memory_space<vmem>>, vector<1x32xf32>
    %cst_12 = arith.constant dense<0.000000e+00> : vector<1x128xf32>
    %14 = tpu.matmul %13, %12, %cst_12 {dimension_numbers = #tpu.dot_dimension_numbers<[1], [0], [0], [1], [0, 0, 1, 1], [], []>} : vector<1x32xf32>, vector<32x128xf32>, vector<1x128xf32> -> vector<1x128xf32>
    %c0_13 = arith.constant 0 : index
    %c0_14 = arith.constant 0 : index
    %15 = vector.load %arg5[%c0_13, %c0_14] : memref<1x1xf32, #tpu.memory_space<vmem>>, vector<1x1xf32>
    %16 = vector.broadcast %15 : vector<1x1xf32> to vector<1x128xf32>
    %17 = arith.addf %14, %16 : vector<1x128xf32>
    %c0_15 = arith.constant 0 : index
    %c0_16 = arith.constant 0 : index
    %c0_17 = arith.constant 0 : index
    %18 = vector.load %arg6[%c0_15, %c0_16, %c0_17] : memref<2x1x128xf32, #tpu.memory_space<vmem>>, vector<1x1x128xf32>
    %19 = vector.shape_cast %18 : vector<1x1x128xf32> to vector<1x128xf32>
    %20 = vector.shape_cast %17 : vector<1x128xf32> to vector<1x1x128xf32>
    tpu.vector_store %arg6[%c0_15, %c0_16, %c0_17], %20 {strides = array<i32>} : memref<2x1x128xf32, #tpu.memory_space<vmem>>, vector<1x1x128xf32>,
    %21 = vector.extract_strided_slice %7 {offsets = [0, 128], sizes = [32, 128], strides = [1, 1]} : vector<32x256xf32> to vector<32x128xf32>
    %c0_18 = arith.constant 0 : index
    %c0_19 = arith.constant 0 : index
    %22 = vector.load %arg3[%c0_18, %c0_19] : memref<128x128xf32, #tpu.memory_space<vmem>>, vector<128x128xf32>
    %cst_20 = arith.constant dense<0.000000e+00> : vector<32x128xf32>
    %23 = tpu.matmul %21, %22, %cst_20 {dimension_numbers = #tpu.dot_dimension_numbers<[1], [0], [0], [1], [0, 0, 1, 1], [], []>} : vector<32x128xf32>, vector<128x128xf32>, vector<32x128xf32> -> vector<32x128xf32>
    %cst_21 = arith.constant 0.000000e+00 : f32
    %24 = vector.broadcast %cst_21 : f32 to vector<32x128xf32>
    %25 = arith.maximumf %23, %24 : vector<32x128xf32>
    %c0_22 = arith.constant 0 : index
    %c0_23 = arith.constant 0 : index
    %26 = vector.load %arg4[%c0_22, %c0_23] : memref<1x32xf32, #tpu.memory_space<vmem>>, vector<1x32xf32>
    %cst_24 = arith.constant dense<0.000000e+00> : vector<1x128xf32>
    %27 = tpu.matmul %26, %25, %cst_24 {dimension_numbers = #tpu.dot_dimension_numbers<[1], [0], [0], [1], [0, 0, 1, 1], [], []>} : vector<1x32xf32>, vector<32x128xf32>, vector<1x128xf32> -> vector<1x128xf32>
    %c0_25 = arith.constant 0 : index
    %c0_26 = arith.constant 0 : index
    %28 = vector.load %arg5[%c0_25, %c0_26] : memref<1x1xf32, #tpu.memory_space<vmem>>, vector<1x1xf32>
    %29 = vector.broadcast %28 : vector<1x1xf32> to vector<1x128xf32>
    %30 = arith.addf %27, %29 : vector<1x128xf32>
    %c1 = arith.constant 1 : index
    %c0_27 = arith.constant 0 : index
    %c0_28 = arith.constant 0 : index
    %31 = vector.load %arg6[%c1, %c0_27, %c0_28] : memref<2x1x128xf32, #tpu.memory_space<vmem>>, vector<1x1x128xf32>
    %32 = vector.shape_cast %31 : vector<1x1x128xf32> to vector<1x128xf32>
    %33 = vector.shape_cast %30 : vector<1x128xf32> to vector<1x1x128xf32>
    tpu.vector_store %arg6[%c1, %c0_27, %c0_28], %33 {strides = array<i32>} : memref<2x1x128xf32, #tpu.memory_space<vmem>>, vector<1x1x128xf32>,
    return
  }
}

</mosaic_0001>

<llo_original>
// kernel: tpu_custom_call.1
$region0: #{tpu_custom_call.1}
  #allocation0 [shape = 'u32[]', space=smem, size = 0x4, offset = 0x4, fixed_abs, tag = 'smem constant byte address 0x4 - core index']
  #allocation1 [shape = 'u32[72,128]{1,0:T(1,128)}', space=vmem, size = 0x9000, scoped, tag = 'internal scratch']
  #allocation2 [shape = 'f32[1,1]{1,0:T(1,128)S(1)}', space=vmem, size = 0x200, scoped, tag = 'scoped memory for tpu_custom_call.1']
  %s0 = inlined_call_operand.vmem [shape: f32[4,256], index: 0, kind: input, shape index: {}]
  %s1 = inlined_call_operand.vmem [shape: f32[32,4], index: 1, kind: input, shape index: {}]
  %s2 = inlined_call_operand.vmem [shape: f32[32,1], index: 2, kind: input, shape index: {}]
  %s3 = inlined_call_operand.hbm [shape: f32[128,128], index: 3, kind: input, shape index: {}]
  %s4 = inlined_call_operand.vmem [shape: f32[1,32], index: 4, kind: input, shape index: {}]
  %s5 = inlined_call_operand.<no memory space> [shape: f32[1,1], index: 5, kind: input, shape index: {}]
  %s6 = inlined_call_operand.hbm [shape: f32[2,1,128], index: 6, kind: output, shape index: {}]
  %s7 = sld [smem:[#allocation0]]
  $region38: #{tpu_custom_call.1} parent=0
    _
  %s9 = ssub.s32 1, %s7
  %s10 = scalar_select 0, %s9, %s7
  %v11 = vstv %s5
  %12 = vst [vmem:[#allocation2] sm:$0x1] %v11
  $region1: #{tpu_custom_call.1} parent=0
    #allocation3 [shape = 'u8[65536]{0}', space=vmem, size = 0x10000, scoped, tag = 'input window, operand 3, single buffered']
    #allocation4 [shape = 's32[1]{0}', space=sflag, size = 0x4, scoped, tag = 'scoped memory for tpu_custom_call.1']
    #allocation5 [shape = 's32[1]{0}', space=sflag, size = 0x4, scoped, tag = 'scoped memory for tpu_custom_call.1']
    #allocation6 [shape = 'u8[1024]{0}', space=vmem, size = 0x400, scoped, tag = 'output window, operand 0, single buffered']
    %13 = vsyncpa [#allocation4], 0
    %14 = vsyncpa [#allocation5], 0
    // Predicated region
    $region2: #{tpu_custom_call.1} parent=1 // pred_check
      _
    $region3: #{tpu_custom_call.1} parent=1 // pred_check_branch
      %16 = sbr.rel (0) target = $region5
    $region4: #{tpu_custom_call.1} parent=1 // pred_region
      _
    $region5: #{tpu_custom_call.1} parent=1 // pred_fallthru
      _
    // Predicated region
    $region6: #{tpu_custom_call.1} parent=1 // pred_check
      _
    $region7: #{tpu_custom_call.1} parent=1 // pred_check_branch
      %18 = sbr.rel (0) target = $region9
    $region8: #{tpu_custom_call.1} parent=1 // pred_region
      _
    $region9: #{tpu_custom_call.1} parent=1 // pred_fallthru
      _
    // Predicated region
    $region10: #{tpu_custom_call.1} parent=1 // pred_check
      _
    $region11: #{tpu_custom_call.1} parent=1 // pred_check_branch
      %20 = sbr.rel (0) target = $region13
    $region12: #{tpu_custom_call.1} parent=1 // pred_region
      _
    $region13: #{tpu_custom_call.1} parent=1 // pred_fallthru
      _
    // Predicated region
    $region14: #{tpu_custom_call.1} parent=1 // pred_check
      _
    $region15: #{tpu_custom_call.1} parent=1 // pred_check_branch
      %22 = sbr.rel (0) target = $region17
    $region16: #{tpu_custom_call.1} parent=1 // pred_region
      %24 = vsyncadd [#allocation4], 0
      %s25 = sshll.u32 %s3, 4
      %s26 = int_to_ptr.hbm [resolvable:$true] %s25
      %s27 = sshll.u32 [#allocation3], 4
      %s28 = int_to_ptr.vmem [resolvable:$true] %s27
      %33 = dma.hbm_to_vmem [thread:$0]  %s26, 2048, %s28, [#allocation4], 128, 128, 8
    $region17: #{tpu_custom_call.1} parent=1 // pred_fallthru
      _
    // Predicated region
    $region18: #{tpu_custom_call.1} parent=1 // pred_check
      _
    $region19: #{tpu_custom_call.1} parent=1 // pred_check_branch
      %35 = sbr.rel (0) target = $region21
    $region20: #{tpu_custom_call.1} parent=1 // pred_region
      _
    $region21: #{tpu_custom_call.1} parent=1 // pred_fallthru
      _
    // Predicated region
    $region22: #{tpu_custom_call.1} parent=1 // pred_check
      _
    $region23: #{tpu_custom_call.1} parent=1 // pred_check_branch
      %37 = sbr.rel (0) target = $region25
    $region24: #{tpu_custom_call.1} parent=1 // pred_region
      _
    $region25: #{tpu_custom_call.1} parent=1 // pred_fallthru
      _
    // Predicated region
    $region26: #{tpu_custom_call.1} parent=1 // pred_check
      _
    $region27: #{tpu_custom_call.1} parent=1 // pred_check_branch
      %39 = sbr.rel (0) target = $region29
    $region28: #{tpu_custom_call.1} parent=1 // pred_region
      %41 = dma.done [#allocation4], 2048
    $region29: #{tpu_custom_call.1} parent=1 // pred_fallthru
      _
    %v42 = vld [vmem:[%s1] sm:$0xff]
    %v43 = vld [vmem:[%s1 + $0x8] sm:$0xff]
    %v44 = vld [vmem:[%s1 + $0x10] sm:$0xff]
    %v45 = vld [vmem:[%s1 + $0x18] sm:$0xff]
    %v46 = vld [vmem:[%s0] sm:$0xff]
    %v47 = vld [vmem:[%s2] sm:$0xff]
    %v48 = vld [vmem:[%s2 + $0x8] sm:$0xff]
    %v49 = vld [vmem:[%s2 + $0x10] sm:$0xff]
    %v50 = vld [vmem:[%s2 + $0x18] sm:$0xff]
    %52 = vset.pattern.permute.xlu0 0
    %53 = vperm.xlu0 %52, %v47
    %v54 = vpop.permute.xlu0 %53
    %57 = vset.pattern.permute.xlu0 0
    %58 = vperm.xlu0 %57, %v48
    %v59 = vpop.permute.xlu0 %58
    %62 = vset.pattern.permute.xlu0 0
    %63 = vperm.xlu0 %62, %v49
    %v64 = vpop.permute.xlu0 %63
    %67 = vset.pattern.permute.xlu0 0
    %68 = vperm.xlu0 %67, %v50
    %v69 = vpop.permute.xlu0 %68
    %72 = vst [vmem:[#allocation1] ss:$2 sm:$0xff] %v46
    %v73 = vld.sshfl [vmem:[#allocation1] sm:$0xff pattern:$0x75316420]
    %v74 = vld.sshfl [vmem:[#allocation1 + $0x8] sm:$0xff pattern:$0x75316420]
    %vm75 = vcmask 31744
    %v77 = vsel %vm75, %v42, 0
    %v80 = vsel %vm75, %v43, 0
    %v83 = vsel %vm75, %v44, 0
    %v86 = vsel %vm75, %v45, 0
    %vm88 = vcmask 1043456
    %v89 = vsel %vm88, %v73, 0
    %v91 = vsel %vm88, %v74, 0
    %93 = vmatpush.msra.mxu0 0.0
    %94 = vmatpush.msra.mxu0 0.0
    %95 = vmatpush.msra.mxu0 0.0
    %96 = vmatpush.msra.mxu0 0.0
    %97 = vmatpush.msra.mxu0 0.0
    %98 = vmatpush.msra.mxu0 0.0
    %99 = vmatpush.msra.mxu0 0.0
    %100 = vmatpush.msra.mxu0 0.0
    %101 = vmatpush.msra.mxu0 0.0
    %102 = vmatpush.msra.mxu0 0.0
    %103 = vmatpush.msra.mxu0 0.0
    %104 = vmatpush.msra.mxu0 0.0
    %105 = vmatpush.msra.mxu0 0.0
    %106 = vmatpush.msra.mxu0 0.0
    %107 = vmatpush.msra.mxu0 0.0
    %108 = vmatpush.msra.mxu0 %v89
    %109 = vmatmul.f32.gmra.mxu0 %v77
    %v110 = vpop.f32.mrf.mxu0
    %v111 = vadd.f32 %v54, %v110
    %112 = vmatmul.f32.gmra.mxu0 %v80
    %v113 = vpop.f32.mrf.mxu0
    %v114 = vadd.f32 %v59, %v113
    %115 = vmatmul.f32.gmra.mxu0 %v83
    %v116 = vpop.f32.mrf.mxu0
    %v117 = vadd.f32 %v64, %v116
    %118 = vmatmul.f32.gmra.mxu0 %v86
    %v119 = vpop.f32.mrf.mxu0
    %v120 = vadd.f32 %v69, %v119
    %121 = vdwg.mxu0
    %122 = vmatpush.msra.mxu0 0.0
    %123 = vmatpush.msra.mxu0 0.0
    %124 = vmatpush.msra.mxu0 0.0
    %125 = vmatpush.msra.mxu0 0.0
    %126 = vmatpush.msra.mxu0 0.0
    %127 = vmatpush.msra.mxu0 0.0
    %128 = vmatpush.msra.mxu0 0.0
    %129 = vmatpush.msra.mxu0 0.0
    %130 = vmatpush.msra.mxu0 0.0
    %131 = vmatpush.msra.mxu0 0.0
    %132 = vmatpush.msra.mxu0 0.0
    %133 = vmatpush.msra.mxu0 0.0
    %134 = vmatpush.msra.mxu0 0.0
    %135 = vmatpush.msra.mxu0 0.0
    %136 = vmatpush.msra.mxu0 0.0
    %137 = vmatpush.msra.mxu0 %v91
    %138 = vmatmul.f32.gmra.mxu0 %v77
    %v139 = vpop.f32.mrf.mxu0
    %v140 = vadd.f32 %v54, %v139
    %141 = vmatmul.f32.gmra.mxu0 %v80
    %v142 = vpop.f32.mrf.mxu0
    %v143 = vadd.f32 %v59, %v142
    %144 = vmatmul.f32.gmra.mxu0 %v83
    %v145 = vpop.f32.mrf.mxu0
    %v146 = vadd.f32 %v64, %v145
    %147 = vmatmul.f32.gmra.mxu0 %v86
    %v148 = vpop.f32.mrf.mxu0
    %v149 = vadd.f32 %v69, %v148
    %150 = vdwg.mxu0
    %v151 = vmax.f32 %v111, 0.0
    %v152 = vmax.f32 %v140, 0.0
    %v153 = vmax.f32 %v114, 0.0
    %v154 = vmax.f32 %v143, 0.0
    %v155 = vmax.f32 %v117, 0.0
    %v156 = vmax.f32 %v146, 0.0
    %v157 = vmax.f32 %v120, 0.0
    %v158 = vmax.f32 %v149, 0.0
    %v159 = vld [vmem:[#allocation3] sm:$0xff]
    %v160 = vld [vmem:[#allocation3 + $0x8] sm:$0xff]
    %v161 = vld [vmem:[#allocation3 + $0x10] sm:$0xff]
    %v162 = vld [vmem:[#allocation3 + $0x18] sm:$0xff]
    %v163 = vld [vmem:[#allocation3 + $0x20] sm:$0xff]
    %v164 = vld [vmem:[#allocation3 + $0x28] sm:$0xff]
    %v165 = vld [vmem:[#allocation3 + $0x30] sm:$0xff]
    %v166 = vld [vmem:[#allocation3 + $0x38] sm:$0xff]
    %v167 = vld [vmem:[#allocation3 + $0x40] sm:$0xff]
    %v168 = vld [vmem:[#allocation3 + $0x48] sm:$0xff]
    %v169 = vld [vmem:[#allocation3 + $0x50] sm:$0xff]
    %v170 = vld [vmem:[#allocation3 + $0x58] sm:$0xff]
    %v171 = vld [vmem:[#allocation3 + $0x60] sm:$0xff]
    %v172 = vld [vmem:[#allocation3 + $0x68] sm:$0xff]
    %v173 = vld [vmem:[#allocation3 + $0x70] sm:$0xff]
    %v174 = vld [vmem:[#allocation3 + $0x78] sm:$0xff]
    %175 = vmatpush.msra.mxu0 %v174
    %176 = vmatpush.msra.mxu0 %v173
    %177 = vmatpush.msra.mxu0 %v172
    %178 = vmatpush.msra.mxu0 %v171
    %179 = vmatpush.msra.mxu0 %v170
    %180 = vmatpush.msra.mxu0 %v169
    %181 = vmatpush.msra.mxu0 %v168
    %182 = vmatpush.msra.mxu0 %v167
    %183 = vmatpush.msra.mxu0 %v166
    %184 = vmatpush.msra.mxu0 %v165
    %185 = vmatpush.msra.mxu0 %v164
    %186 = vmatpush.msra.mxu0 %v163
    %187 = vmatpush.msra.mxu0 %v162
    %188 = vmatpush.msra.mxu0 %v161
    %189 = vmatpush.msra.mxu0 %v160
    %190 = vmatpush.msra.mxu0 %v159
    %191 = vmatmul.f32.gmra.mxu0 %v151
    %v192 = vpop.f32.mrf.mxu0
    %v193 = vadd.f32 0.0, %v192
    %194 = vmatmul.f32.gmra.mxu0 %v153
    %v195 = vpop.f32.mrf.mxu0
    %v196 = vadd.f32 0.0, %v195
    %197 = vmatmul.f32.gmra.mxu0 %v155
    %v198 = vpop.f32.mrf.mxu0
    %v199 = vadd.f32 0.0, %v198
    %200 = vmatmul.f32.gmra.mxu0 %v157
    %v201 = vpop.f32.mrf.mxu0
    %v202 = vadd.f32 0.0, %v201
    %203 = vdwg.mxu0
    %v204 = vmax.f32 %v193, 0.0
    %v205 = vmax.f32 %v196, 0.0
    %v206 = vmax.f32 %v199, 0.0
    %v207 = vmax.f32 %v202, 0.0
    %v208 = vld [vmem:[%s4] sm:$0x1]
    %v209 = vld [vmem:[#allocation2] sm:$0x1]
    %211 = vset.pattern.permute.xlu0 0
    %212 = vperm.xlu0 %211, %v209
    %v213 = vpop.permute.xlu0 %212
    %v215 = vperm.slane %v213, 0
    %vm216 = vcmask 261120
    %v218 = vsel %vm216, %v208, 0
    %220 = vmatpush.msra.mxu0 0.0
    %221 = vmatpush.msra.mxu0 0.0
    %222 = vmatpush.msra.mxu0 0.0
    %223 = vmatpush.msra.mxu0 0.0
    %224 = vmatpush.msra.mxu0 0.0
    %225 = vmatpush.msra.mxu0 0.0
    %226 = vmatpush.msra.mxu0 0.0
    %227 = vmatpush.msra.mxu0 0.0
    %228 = vmatpush.msra.mxu0 0.0
    %229 = vmatpush.msra.mxu0 0.0
    %230 = vmatpush.msra.mxu0 0.0
    %231 = vmatpush.msra.mxu0 0.0
    %232 = vmatpush.msra.mxu0 %v207
    %233 = vmatpush.msra.mxu0 %v206
    %234 = vmatpush.msra.mxu0 %v205
    %235 = vmatpush.msra.mxu0 %v204
    %236 = vmatmul.f32.gmra.mxu0 %v218
    %v237 = vpop.f32.mrf.mxu0
    %v238 = vadd.f32 %v215, %v237
    %239 = vdwg.mxu0
    %240 = vst [vmem:[#allocation6] sm:$0x1] %v238
    %v241 = vld [vmem:[#allocation3] sm:$0xff]
    %v242 = vld [vmem:[#allocation3 + $0x8] sm:$0xff]
    %v243 = vld [vmem:[#allocation3 + $0x10] sm:$0xff]
    %v244 = vld [vmem:[#allocation3 + $0x18] sm:$0xff]
    %v245 = vld [vmem:[#allocation3 + $0x20] sm:$0xff]
    %v246 = vld [vmem:[#allocation3 + $0x28] sm:$0xff]
    %v247 = vld [vmem:[#allocation3 + $0x30] sm:$0xff]
    %v248 = vld [vmem:[#allocation3 + $0x38] sm:$0xff]
    %v249 = vld [vmem:[#allocation3 + $0x40] sm:$0xff]
    %v250 = vld [vmem:[#allocation3 + $0x48] sm:$0xff]
    %v251 = vld [vmem:[#allocation3 + $0x50] sm:$0xff]
    %v252 = vld [vmem:[#allocation3 + $0x58] sm:$0xff]
    %v253 = vld [vmem:[#allocation3 + $0x60] sm:$0xff]
    %v254 = vld [vmem:[#allocation3 + $0x68] sm:$0xff]
    %v255 = vld [vmem:[#allocation3 + $0x70] sm:$0xff]
    %v256 = vld [vmem:[#allocation3 + $0x78] sm:$0xff]
    %257 = vmatpush.msra.mxu0 %v256
    %258 = vmatpush.msra.mxu0 %v255
    %259 = vmatpush.msra.mxu0 %v254
    %260 = vmatpush.msra.mxu0 %v253
    %261 = vmatpush.msra.mxu0 %v252
    %262 = vmatpush.msra.mxu0 %v251
    %263 = vmatpush.msra.mxu0 %v250
    %264 = vmatpush.msra.mxu0 %v249
    %265 = vmatpush.msra.mxu0 %v248
    %266 = vmatpush.msra.mxu0 %v247
    %267 = vmatpush.msra.mxu0 %v246
    %268 = vmatpush.msra.mxu0 %v245
    %269 = vmatpush.msra.mxu0 %v244
    %270 = vmatpush.msra.mxu0 %v243
    %271 = vmatpush.msra.mxu0 %v242
    %272 = vmatpush.msra.mxu0 %v241
    %273 = vmatmul.f32.gmra.mxu0 %v152
    %v274 = vpop.f32.mrf.mxu0
    %v275 = vadd.f32 0.0, %v274
    %276 = vmatmul.f32.gmra.mxu0 %v154
    %v277 = vpop.f32.mrf.mxu0
    %v278 = vadd.f32 0.0, %v277
    %279 = vmatmul.f32.gmra.mxu0 %v156
    %v280 = vpop.f32.mrf.mxu0
    %v281 = vadd.f32 0.0, %v280
    %282 = vmatmul.f32.gmra.mxu0 %v158
    %v283 = vpop.f32.mrf.mxu0
    %v284 = vadd.f32 0.0, %v283
    %285 = vdwg.mxu0
    %v286 = vmax.f32 %v275, 0.0
    %v287 = vmax.f32 %v278, 0.0
    %v288 = vmax.f32 %v281, 0.0
    %v289 = vmax.f32 %v284, 0.0
    %v290 = vld [vmem:[%s4] sm:$0x1]
    %v291 = vld [vmem:[#allocation2] sm:$0x1]
    %293 = vset.pattern.permute.xlu0 0
    %294 = vperm.xlu0 %293, %v291
    %v295 = vpop.permute.xlu0 %294
    %v297 = vperm.slane %v295, 0
    %v299 = vsel %vm216, %v290, 0
    %301 = vmatpush.msra.mxu0 0.0
    %302 = vmatpush.msra.mxu0 0.0
    %303 = vmatpush.msra.mxu0 0.0
    %304 = vmatpush.msra.mxu0 0.0
    %305 = vmatpush.msra.mxu0 0.0
    %306 = vmatpush.msra.mxu0 0.0
    %307 = vmatpush.msra.mxu0 0.0
    %308 = vmatpush.msra.mxu0 0.0
    %309 = vmatpush.msra.mxu0 0.0
    %310 = vmatpush.msra.mxu0 0.0
    %311 = vmatpush.msra.mxu0 0.0
    %312 = vmatpush.msra.mxu0 0.0
    %313 = vmatpush.msra.mxu0 %v289
    %314 = vmatpush.msra.mxu0 %v288
    %315 = vmatpush.msra.mxu0 %v287
    %316 = vmatpush.msra.mxu0 %v286
    %317 = vmatmul.f32.gmra.mxu0 %v299
    %v318 = vpop.f32.mrf.mxu0
    %v319 = vadd.f32 %v297, %v318
    %320 = vdwg.mxu0
    %s321 = scalar_lea.vmem [#allocation6], 1
    %322 = vst [vmem:[%s321] sm:$0x1] %v319
    // Predicated region
    $region30: #{tpu_custom_call.1} parent=1 // pred_check
      _
    $region31: #{tpu_custom_call.1} parent=1 // pred_check_branch
      %324 = sbr.rel (0) target = $region33
    $region32: #{tpu_custom_call.1} parent=1 // pred_region
      %326 = vsyncadd [#allocation5], 0
      %s327 = sshll.u32 [#allocation6], 4
      %s328 = int_to_ptr.vmem [resolvable:$true] %s327
      %s329 = sshll.u32 %s6, 4
      %s330 = int_to_ptr.hbm [resolvable:$true] %s329
      %335 = dma.vmem_to_hbm [thread:$0]  %s328, 32, %s330, [#allocation5], 16, 16, 1
    $region33: #{tpu_custom_call.1} parent=1 // pred_fallthru
      _
    // Predicated region
    $region34: #{tpu_custom_call.1} parent=1 // pred_check
      _
    $region35: #{tpu_custom_call.1} parent=1 // pred_check_branch
      %337 = sbr.rel (0) target = $region37
    $region36: #{tpu_custom_call.1} parent=1 // pred_region
      %339 = dma.done [#allocation5], 32
    $region37: #{tpu_custom_call.1} parent=1 // pred_fallthru
      _
    %340 = vsyncpa [#allocation4], 1
    %341 = vsyncpa [#allocation5], 1

</llo_original>
